<compile_context>
chip_gen: v6e
topology: v6e:2x2x1
jax: 0.10.0
libtpu: 0.0.40
codegen_flags: <defaults>
</compile_context>

<pallas_src>
import jax
import jax.numpy as jnp
from jax.experimental import pallas as pl
from jax.experimental.pallas import tpu as pltpu

LANE = 128  # TPU vreg lane width


def _round_up(x, m):
    return (x + m - 1) // m * m


def _mlp_kernel(x_ref, w1_ref, b1_ref, w2_ref, b2_ref, w3_ref, b3_ref, o_ref):
    # Activations arrive unpadded f32; cast to bf16 in-register to feed the MXU.
    x = x_ref[...].astype(jnp.bfloat16)                                 # (TB, Ni)

    # fc1 + ReLU (f32 accumulate / epilogue)
    h1 = jnp.dot(x, w1_ref[...], preferred_element_type=jnp.float32) + b1_ref[...]
    h1 = jnp.maximum(h1, 0.0).astype(jnp.bfloat16)                      # (TB, Nh1_p)

    # fc2 + ReLU
    h2 = jnp.dot(h1, w2_ref[...], preferred_element_type=jnp.float32) + b2_ref[...]
    h2 = jnp.maximum(h2, 0.0).astype(jnp.bfloat16)                      # (TB, Nh2_p)

    # fc3: true output width No (no padded logit lanes -> no masking needed).
    z = jnp.dot(h2, w3_ref[...], preferred_element_type=jnp.float32) + b3_ref[...]

    # Numerically stable LogSoftmax over dim=1 (features).
    z_max = jnp.max(z, axis=1, keepdims=True)
    shifted = z - z_max
    lse = jnp.log(jnp.sum(jnp.exp(shifted), axis=1, keepdims=True))
    o_ref[...] = (shifted - lse).astype(o_ref.dtype)                    # single store


def prepare_params(params):
    """One-time prep: pad hidden dims to 128 lanes, cast weights to bf16.

    `params` holds w1/w2/w3 as (in_features, out_features) and b1/b2/b3 as
    (1, out_features), all f32 (PyTorch's (out, in) layout would be transposed
    here). Zero-padded hidden rows/cols + zero bias lanes keep the padded math
    exact: padded h1/h2 lanes are relu(0) = 0 and contribute nothing downstream.
    Ni (input) and No (output) dims are NOT padded.
    """
    w1, b1, w2, b2, w3, b3 = (params[k] for k in ("w1", "b1", "w2", "b2", "w3", "b3"))
    Ni, Nh1 = w1.shape
    Nh2, No = w3.shape
    Nh1_p = _round_up(Nh1, LANE)
    Nh2_p = _round_up(Nh2, LANE)

    w1p = jnp.zeros((Ni, Nh1_p), jnp.bfloat16).at[:, :Nh1].set(w1.astype(jnp.bfloat16))
    w2p = jnp.zeros((Nh1_p, Nh2_p), jnp.bfloat16).at[:Nh1, :Nh2].set(w2.astype(jnp.bfloat16))
    w3p = jnp.zeros((Nh2_p, No), jnp.bfloat16).at[:Nh2, :].set(w3.astype(jnp.bfloat16))
    b1p = jnp.zeros((1, Nh1_p), jnp.float32).at[:, :Nh1].set(b1.reshape(1, -1).astype(jnp.float32))
    b2p = jnp.zeros((1, Nh2_p), jnp.float32).at[:, :Nh2].set(b2.reshape(1, -1).astype(jnp.float32))
    b3p = b3.reshape(1, -1).astype(jnp.float32)
    return dict(w1=w1p, b1=b1p, w2=w2p, b2=b2p, w3=w3p, b3=b3p)


def net_forward(x, prepared, *, block_b=1024):
    """x: (B, Ni) float32; prepared: output of prepare_params()."""
    w1p, b1p, w2p, b2p, w3p, b3p = (
        prepared[k] for k in ("w1", "b1", "w2", "b2", "w3", "b3"))
    B, Ni = x.shape
    assert w1p.shape[0] == Ni, "input feature dim mismatch"
    No = w3p.shape[1]

    # Batch tile: multiple of 16 (bf16 sublane packing), capped at block_b.
    TB = min(_round_up(block_b, 16), _round_up(B, 16))
    # v7x megacore: ensure >=2 grid tiles when the batch allows it, so the
    # "parallel" batch axis feeds both TensorCores (no-op on v5e/v6e).
    if B > 16 and _round_up(B, TB) // TB < 2:
        TB = _round_up(pl.cdiv(B, 2), 16)
    Bp = _round_up(B, TB)

    # Only batch-row padding, and only when needed (no feature-dim padding and
    # no wrapper-side bf16 copy of the activation stream).
    x_in = x if Bp == B else jnp.zeros((Bp, Ni), x.dtype).at[:B].set(x)

    grid = (Bp // TB,)
    # Weights/biases: constant index_map -> loaded once, VMEM-resident.
    resident = lambda shape: pl.BlockSpec(shape, lambda i: (0, 0))

    out = pl.pallas_call(
        _mlp_kernel,
        out_shape=jax.ShapeDtypeStruct((Bp, No), jnp.float32),
        grid_spec=pl.GridSpec(
            grid=grid,
            in_specs=[
                pl.BlockSpec((TB, Ni), lambda i: (i, 0)),  # activations: batch-tiled
                resident(w1p.shape),
                resident(b1p.shape),
                resident(w2p.shape),
                resident(b2p.shape),
                resident(w3p.shape),
                resident(b3p.shape),
            ],
            out_specs=pl.BlockSpec((TB, No), lambda i: (i, 0)),
        ),
        compiler_params=pltpu.CompilerParams(
            dimension_semantics=("parallel",),  # shard batch tiles across TCs (v7x)
        ),
    )(x_in, w1p, b1p, w2p, b2p, w3p, b3p)

    # Padded rows (if any) carry garbage log-probs; slice them off here.
    return out if Bp == B else out[:B]


def init_params(key, Ni, Nh1, Nh2, No):
    """Deterministic synthetic params (weights stored as (in, out))."""
    ks = jax.random.split(key, 6)

    def lin(kw, kb, fan_in, fan_out):
        bound = 1.0 / jnp.sqrt(fan_in)
        w = jax.random.uniform(kw, (fan_in, fan_out), jnp.float32, -bound, bound)
        b = jax.random.uniform(kb, (1, fan_out), jnp.float32, -bound, bound)
        return w, b

    w1, b1 = lin(ks[0], ks[1], Ni, Nh1)
    w2, b2 = lin(ks[2], ks[3], Nh1, Nh2)
    w3, b3 = lin(ks[4], ks[5], Nh2, No)
    return dict(w1=w1, b1=b1, w2=w2, b2=b2, w3=w3, b3=b3)


if __name__ == "__main__":
    # Small shapes consistent with the module's forward (flat feature vectors).
    # TODO(synk): the `additional_out=True` branch (host-side argmax over
    # exp(log_probs) of row 0) is Python post-processing, not a kernel op.
    B, Ni, Nh1, Nh2, No = 32, 64, 32, 32, 16

    key = jax.random.PRNGKey(0)
    kx, kp = jax.random.split(key)
    x = jax.random.normal(kx, (B, Ni), dtype=jnp.float32)
    params = init_params(kp, Ni, Nh1, Nh2, No)
    prepared = prepare_params(params)  # one-time pad + bf16 cast, out of hot path

    out = jax.block_until_ready(net_forward(x, prepared))

    # Reference in plain JAX mirroring the kernel's bf16-operand / f32-accum scheme.
    xb = x.astype(jnp.bfloat16)
    w1b, w2b, w3b = (params[k].astype(jnp.bfloat16) for k in ("w1", "w2", "w3"))
    h1 = jnp.maximum(
        jnp.dot(xb, w1b, preferred_element_type=jnp.float32) + params["b1"], 0.0
    ).astype(jnp.bfloat16)
    h2 = jnp.maximum(
        jnp.dot(h1, w2b, preferred_element_type=jnp.float32) + params["b2"], 0.0
    ).astype(jnp.bfloat16)
    z = jnp.dot(h2, w3b, preferred_element_type=jnp.float32) + params["b3"]
    ref = jax.nn.log_softmax(z, axis=1)

    assert out.shape == (B, No)
    assert jnp.allclose(out, ref, atol=2e-3, rtol=2e-3), "mismatch vs reference"

    print("KERNEL_OK")
</pallas_src>

<mosaic_0001>
module attributes {stable_mosaic.version = 11 : i64} {
  func.func @_mlp_kernel(%arg0: i32, %arg1: memref<16x64xf32, #tpu.memory_space<vmem>>, %arg2: memref<64x128xbf16, #tpu.memory_space<vmem>>, %arg3: memref<1x128xf32, #tpu.memory_space<vmem>>, %arg4: memref<128x128xbf16, #tpu.memory_space<vmem>>, %arg5: memref<1x128xf32, #tpu.memory_space<vmem>>, %arg6: memref<128x16xbf16, #tpu.memory_space<vmem>>, %arg7: memref<1x16xf32, #tpu.memory_space<vmem>>, %arg8: memref<16x16xf32, #tpu.memory_space<vmem>>) attributes {dimension_semantics = [#tpu.dimension_semantics<parallel>], iteration_bounds = array<i64: 2>, scalar_prefetch = 0 : i64, scratch_operands = 0 : i64, tpu.core_type = #tpu.core_type<tc>, window_params = [{transform_indices = @transform_0, window_bounds = array<i64: 16, 64>}, {pipeline_mode = #tpu.pipeline_mode<synchronous>, transform_indices = @transform_1, window_bounds = array<i64: 64, 128>}, {pipeline_mode = #tpu.pipeline_mode<synchronous>, transform_indices = @transform_2, window_bounds = array<i64: 1, 128>}, {pipeline_mode = #tpu.pipeline_mode<synchronous>, transform_indices = @transform_3, window_bounds = array<i64: 128, 128>}, {pipeline_mode = #tpu.pipeline_mode<synchronous>, transform_indices = @transform_4, window_bounds = array<i64: 1, 128>}, {pipeline_mode = #tpu.pipeline_mode<synchronous>, transform_indices = @transform_5, window_bounds = array<i64: 128, 16>}, {pipeline_mode = #tpu.pipeline_mode<synchronous>, transform_indices = @transform_6, window_bounds = array<i64: 1, 16>}, {transform_indices = @transform_7, window_bounds = array<i64: 16, 16>}]} {
    %c0 = arith.constant 0 : index
    %c0_0 = arith.constant 0 : index
    %0 = vector.load %arg1[%c0, %c0_0] : memref<16x64xf32, #tpu.memory_space<vmem>>, vector<16x64xf32>
    %1 = arith.truncf %0 : vector<16x64xf32> to vector<16x64xbf16>
    %c0_1 = arith.constant 0 : index
    %c0_2 = arith.constant 0 : index
    %2 = vector.load %arg2[%c0_1, %c0_2] : memref<64x128xbf16, #tpu.memory_space<vmem>>, vector<64x128xbf16>
    %cst = arith.constant dense<0.000000e+00> : vector<16x128xf32>
    %3 = tpu.matmul %1, %2, %cst {dimension_numbers = #tpu.dot_dimension_numbers<[1], [0], [0], [1], [0, 0, 1, 1], [], []>} : vector<16x64xbf16>, vector<64x128xbf16>, vector<16x128xf32> -> vector<16x128xf32>
    %c0_3 = arith.constant 0 : index
    %c0_4 = arith.constant 0 : index
    %4 = vector.load %arg3[%c0_3, %c0_4] : memref<1x128xf32, #tpu.memory_space<vmem>>, vector<1x128xf32>
    %5 = vector.broadcast %4 : vector<1x128xf32> to vector<16x128xf32>
    %6 = arith.addf %3, %5 : vector<16x128xf32>
    %cst_5 = arith.constant 0.000000e+00 : f32
    %7 = vector.broadcast %cst_5 : f32 to vector<16x128xf32>
    %8 = arith.maximumf %6, %7 : vector<16x128xf32>
    %9 = arith.truncf %8 : vector<16x128xf32> to vector<16x128xbf16>
    %c0_6 = arith.constant 0 : index
    %c0_7 = arith.constant 0 : index
    %10 = vector.load %arg4[%c0_6, %c0_7] : memref<128x128xbf16, #tpu.memory_space<vmem>>, vector<128x128xbf16>
    %cst_8 = arith.constant dense<0.000000e+00> : vector<16x128xf32>
    %11 = tpu.matmul %9, %10, %cst_8 {dimension_numbers = #tpu.dot_dimension_numbers<[1], [0], [0], [1], [0, 0, 1, 1], [], []>} : vector<16x128xbf16>, vector<128x128xbf16>, vector<16x128xf32> -> vector<16x128xf32>
    %c0_9 = arith.constant 0 : index
    %c0_10 = arith.constant 0 : index
    %12 = vector.load %arg5[%c0_9, %c0_10] : memref<1x128xf32, #tpu.memory_space<vmem>>, vector<1x128xf32>
    %13 = vector.broadcast %12 : vector<1x128xf32> to vector<16x128xf32>
    %14 = arith.addf %11, %13 : vector<16x128xf32>
    %cst_11 = arith.constant 0.000000e+00 : f32
    %15 = vector.broadcast %cst_11 : f32 to vector<16x128xf32>
    %16 = arith.maximumf %14, %15 : vector<16x128xf32>
    %17 = arith.truncf %16 : vector<16x128xf32> to vector<16x128xbf16>
    %c0_12 = arith.constant 0 : index
    %c0_13 = arith.constant 0 : index
    %18 = vector.load %arg6[%c0_12, %c0_13] : memref<128x16xbf16, #tpu.memory_space<vmem>>, vector<128x16xbf16>
    %cst_14 = arith.constant dense<0.000000e+00> : vector<16x16xf32>
    %19 = tpu.matmul %17, %18, %cst_14 {dimension_numbers = #tpu.dot_dimension_numbers<[1], [0], [0], [1], [0, 0, 1, 1], [], []>} : vector<16x128xbf16>, vector<128x16xbf16>, vector<16x16xf32> -> vector<16x16xf32>
    %c0_15 = arith.constant 0 : index
    %c0_16 = arith.constant 0 : index
    %20 = vector.load %arg7[%c0_15, %c0_16] : memref<1x16xf32, #tpu.memory_space<vmem>>, vector<1x16xf32>
    %21 = vector.broadcast %20 : vector<1x16xf32> to vector<16x16xf32>
    %22 = arith.addf %19, %21 : vector<16x16xf32>
    %cst_17 = arith.constant dense<0xFF800000> : vector<16xf32>
    %23 = vector.multi_reduction <maximumf>, %22, %cst_17 [1] : vector<16x16xf32> to vector<16xf32>
    %24 = vector.shape_cast %23 : vector<16xf32> to vector<16x1xf32>
    %25 = vector.broadcast %24 : vector<16x1xf32> to vector<16x16xf32>
    %26 = arith.subf %22, %25 : vector<16x16xf32>
    %27 = math.exp %26 : vector<16x16xf32>
    %cst_18 = arith.constant dense<0.000000e+00> : vector<16xf32>
    %28 = vector.multi_reduction <add>, %27, %cst_18 [1] : vector<16x16xf32> to vector<16xf32>
    %29 = vector.shape_cast %28 : vector<16xf32> to vector<16x1xf32>
    %30 = math.log %29 : vector<16x1xf32>
    %31 = vector.broadcast %30 : vector<16x1xf32> to vector<16x16xf32>
    %32 = arith.subf %26, %31 : vector<16x16xf32>
    %c0_19 = arith.constant 0 : index
    %c0_20 = arith.constant 0 : index
    %33 = vector.load %arg8[%c0_19, %c0_20] : memref<16x16xf32, #tpu.memory_space<vmem>>, vector<16x16xf32>
    tpu.vector_store %arg8[%c0_19, %c0_20], %32 {strides = array<i32>} : memref<16x16xf32, #tpu.memory_space<vmem>>, vector<16x16xf32>,
    return
  }
  func.func @transform_0(%arg0: i32) -> (i32, i32) {
    %c0_i32 = arith.constant 0 : i32
    %c0_i32_0 = arith.constant 0 : i32
    return %arg0, %c0_i32 : i32, i32
  }
  func.func @transform_1(%arg0: i32) -> (i32, i32) {
    %c0_i32 = arith.constant 0 : i32
    %c0_i32_0 = arith.constant 0 : i32
    %c0_i32_1 = arith.constant 0 : i32
    return %c0_i32, %c0_i32_0 : i32, i32
  }
  func.func @transform_2(%arg0: i32) -> (i32, i32) {
    %c0_i32 = arith.constant 0 : i32
    %c0_i32_0 = arith.constant 0 : i32
    %c0_i32_1 = arith.constant 0 : i32
    return %c0_i32, %c0_i32_0 : i32, i32
  }
  func.func @transform_3(%arg0: i32) -> (i32, i32) {
    %c0_i32 = arith.constant 0 : i32
    %c0_i32_0 = arith.constant 0 : i32
    %c0_i32_1 = arith.constant 0 : i32
    return %c0_i32, %c0_i32_0 : i32, i32
  }
  func.func @transform_4(%arg0: i32) -> (i32, i32) {
    %c0_i32 = arith.constant 0 : i32
    %c0_i32_0 = arith.constant 0 : i32
    %c0_i32_1 = arith.constant 0 : i32
    return %c0_i32, %c0_i32_0 : i32, i32
  }
  func.func @transform_5(%arg0: i32) -> (i32, i32) {
    %c0_i32 = arith.constant 0 : i32
    %c0_i32_0 = arith.constant 0 : i32
    %c0_i32_1 = arith.constant 0 : i32
    return %c0_i32, %c0_i32_0 : i32, i32
  }
  func.func @transform_6(%arg0: i32) -> (i32, i32) {
    %c0_i32 = arith.constant 0 : i32
    %c0_i32_0 = arith.constant 0 : i32
    %c0_i32_1 = arith.constant 0 : i32
    return %c0_i32, %c0_i32_0 : i32, i32
  }
  func.func @transform_7(%arg0: i32) -> (i32, i32) {
    %c0_i32 = arith.constant 0 : i32
    %c0_i32_0 = arith.constant 0 : i32
    return %arg0, %c0_i32 : i32, i32
  }
}

</mosaic_0001>

<llo_original>
// kernel: tpu_custom_call.1
$region0: #{tpu_custom_call.1}
  #allocation0 [shape = 'u32[]', space=smem, size = 0x4, offset = 0x4, fixed_abs, tag = 'smem constant byte address 0x4 - core index']
  #allocation1 [shape = 'u32[144,128]{1,0:T(1,128)}', space=vmem, size = 0x12000, scoped, tag = 'internal scratch']
  %s0 = inlined_call_operand.hbm [shape: f32[32,64], index: 0, kind: input, shape index: {}]
  %s1 = inlined_call_operand.hbm [shape: bf16[64,128], index: 1, kind: input, shape index: {}]
  %s2 = inlined_call_operand.vmem [shape: f32[1,128], index: 2, kind: input, shape index: {}]
  %s3 = inlined_call_operand.vmem [shape: bf16[128,128], index: 3, kind: input, shape index: {}]
  %s4 = inlined_call_operand.vmem [shape: f32[1,128], index: 4, kind: input, shape index: {}]
  %s5 = inlined_call_operand.vmem [shape: bf16[128,16], index: 5, kind: input, shape index: {}]
  %s6 = inlined_call_operand.vmem [shape: f32[1,16], index: 6, kind: input, shape index: {}]
  %s7 = inlined_call_operand.vmem [shape: f32[32,16], index: 7, kind: output, shape index: {}]
  %s8 = sld [smem:[#allocation0]]
  $region69: #{tpu_custom_call.1} parent=0
    _
  %s10 = ssub.s32 1, %s8
  %s11 = scalar_select 0, %s10, %s8
  $region1: #{tpu_custom_call.1} parent=0
    #allocation2 [shape = 'u8[16384]{0}', space=vmem, size = 0x4000, scoped, tag = 'input window, operand 0']
    #allocation3 [shape = 's32[2]{0}', space=sflag, size = 0x8, scoped, tag = 'scoped memory for tpu_custom_call.1']
    #allocation4 [shape = 'u8[16384]{0}', space=vmem, size = 0x4000, scoped, tag = 'input window, operand 1, single buffered']
    #allocation5 [shape = 's32[1]{0}', space=sflag, size = 0x4, scoped, tag = 'scoped memory for tpu_custom_call.1']
    %12 = vsyncpa [#allocation3], 0
    %s13 = scalar_lea.sflag [#allocation3], 1
    %14 = vsyncpa %s13, 0
    %15 = vsyncpa [#allocation5], 0
    loop: start=0, step=1, limit=4
    $region2: #{tpu_custom_call.1} parent=1 // loop_pre_header
      _
    $region3: #{tpu_custom_call.1} parent=1 // loop_header
      %s17 = sphi 0, %s21
      %p18 = scmp.ge.s32.totalorder %s17, 4
      %s27 = sphi 0, %s29
      %s30 = sphi 0, %s27
      %s31 = sphi 0, %s30
      %s47 = sphi 0, %s31
      %s51 = sphi 0, %s51
      %s53 = sphi 0, %s51
      %s54 = sphi 0, %s53
      %s68 = sphi 0, %s54
      %s72 = sphi 0, %s72
      %s74 = sphi 0, %s72
      %s75 = sphi 0, %s74
      %s89 = sphi 0, %s75
      %s93 = sphi 0, %s93
      %s95 = sphi 0, %s93
      %s96 = sphi 0, %s95
      %s110 = sphi 0, %s96
      %s114 = sphi 0, %s114
      %s116 = sphi 0, %s114
      %s117 = sphi 0, %s116
      %s131 = sphi 0, %s117
      %s135 = sphi 0, %s135
      %s137 = sphi 0, %s135
      %s138 = sphi 0, %s137
      %s152 = sphi 0, %s138
      %s156 = sphi 0, %s156
      %s158 = sphi 0, %s156
      %s159 = sphi 0, %s158
      %s173 = sphi 0, %s159
      %s179 = sphi 0, %s181
      %s182 = sphi 0, %s179
      %s183 = sphi 0, %s182
      %s199 = sphi 0, %s183
    $region4: #{tpu_custom_call.1} parent=1 // loop_header_branch
      %20 = sbr.rel (%p18) target = $region8
    $region5: #{tpu_custom_call.1} parent=1 // loop_body
      %s22 = ssub.s32 %s17, 1
      %s23 = ssub.s32 %s17, 2
      %s24 = sadd.s32 %s17, 1
      %s25 = ssub.s32 %s17, %s24
      %p26 = scmp.eq.s32.totalorder %s25, 0
      %s28 = sadd.s32 %s27, 1
      %s29 = scalar_select %p26, %s27, %s28
      %p32 = pneg %p26
      %p33 = scmp.eq.s32.totalorder %s17, 1
      %p34 = por %p32, %p33
      %p35 = scmp.ne.s32.totalorder %s27, %s30
      %p36 = scmp.eq.s32.totalorder %s17, 0
      %p37 = por %p35, %p36
      %p38 = scmp.ne.s32.totalorder %s27, %s30
      %p39 = scmp.eq.s32.totalorder %s22, 1
      %p40 = por %p38, %p39
      %p41 = scmp.ne.s32.totalorder %s30, %s31
      %p42 = scmp.eq.s32.totalorder %s22, 0
      %p43 = por %p41, %p42
      %p44 = scmp.ne.s32.totalorder %s30, %s31
      %p45 = scmp.eq.s32.totalorder %s23, 1
      %p46 = por %p44, %p45
      %p48 = scmp.ne.s32.totalorder %s31, %s47
      %p49 = scmp.eq.s32.totalorder %s23, 0
      %p50 = por %p48, %p49
      %s52 = sadd.s32 %s51, 1
      %p55 = scmp.eq.s32.totalorder %s17, 1
      %p56 = scmp.ne.s32.totalorder %s51, %s53
      %p57 = scmp.eq.s32.totalorder %s17, 0
      %p58 = por %p56, %p57
      %p59 = scmp.ne.s32.totalorder %s51, %s53
      %p60 = scmp.eq.s32.totalorder %s22, 1
      %p61 = por %p59, %p60
      %p62 = scmp.ne.s32.totalorder %s53, %s54
      %p63 = scmp.eq.s32.totalorder %s22, 0
      %p64 = por %p62, %p63
      %p65 = scmp.ne.s32.totalorder %s53, %s54
      %p66 = scmp.eq.s32.totalorder %s23, 1
      %p67 = por %p65, %p66
      %p69 = scmp.ne.s32.totalorder %s54, %s68
      %p70 = scmp.eq.s32.totalorder %s23, 0
      %p71 = por %p69, %p70
      %s73 = sadd.s32 %s72, 1
      %p76 = scmp.eq.s32.totalorder %s17, 1
      %p77 = scmp.ne.s32.totalorder %s72, %s74
      %p78 = scmp.eq.s32.totalorder %s17, 0
      %p79 = por %p77, %p78
      %p80 = scmp.ne.s32.totalorder %s72, %s74
      %p81 = scmp.eq.s32.totalorder %s22, 1
      %p82 = por %p80, %p81
      %p83 = scmp.ne.s32.totalorder %s74, %s75
      %p84 = scmp.eq.s32.totalorder %s22, 0
      %p85 = por %p83, %p84
      %p86 = scmp.ne.s32.totalorder %s74, %s75
      %p87 = scmp.eq.s32.totalorder %s23, 1
      %p88 = por %p86, %p87
      %p90 = scmp.ne.s32.totalorder %s75, %s89
      %p91 = scmp.eq.s32.totalorder %s23, 0
      %p92 = por %p90, %p91
      %s94 = sadd.s32 %s93, 1
      %p97 = scmp.eq.s32.totalorder %s17, 1
      %p98 = scmp.ne.s32.totalorder %s93, %s95
      %p99 = scmp.eq.s32.totalorder %s17, 0
      %p100 = por %p98, %p99
      %p101 = scmp.ne.s32.totalorder %s93, %s95
      %p102 = scmp.eq.s32.totalorder %s22, 1
      %p103 = por %p101, %p102
      %p104 = scmp.ne.s32.totalorder %s95, %s96
      %p105 = scmp.eq.s32.totalorder %s22, 0
      %p106 = por %p104, %p105
      %p107 = scmp.ne.s32.totalorder %s95, %s96
      %p108 = scmp.eq.s32.totalorder %s23, 1
      %p109 = por %p107, %p108
      %p111 = scmp.ne.s32.totalorder %s96, %s110
      %p112 = scmp.eq.s32.totalorder %s23, 0
      %p113 = por %p111, %p112
      %s115 = sadd.s32 %s114, 1
      %p118 = scmp.eq.s32.totalorder %s17, 1
      %p119 = scmp.ne.s32.totalorder %s114, %s116
      %p120 = scmp.eq.s32.totalorder %s17, 0
      %p121 = por %p119, %p120
      %p122 = scmp.ne.s32.totalorder %s114, %s116
      %p123 = scmp.eq.s32.totalorder %s22, 1
      %p124 = por %p122, %p123
      %p125 = scmp.ne.s32.totalorder %s116, %s117
      %p126 = scmp.eq.s32.totalorder %s22, 0
      %p127 = por %p125, %p126
      %p128 = scmp.ne.s32.totalorder %s116, %s117
      %p129 = scmp.eq.s32.totalorder %s23, 1
      %p130 = por %p128, %p129
      %p132 = scmp.ne.s32.totalorder %s117, %s131
      %p133 = scmp.eq.s32.totalorder %s23, 0
      %p134 = por %p132, %p133
      %s136 = sadd.s32 %s135, 1
      %p139 = scmp.eq.s32.totalorder %s17, 1
      %p140 = scmp.ne.s32.totalorder %s135, %s137
      %p141 = scmp.eq.s32.totalorder %s17, 0
      %p142 = por %p140, %p141
      %p143 = scmp.ne.s32.totalorder %s135, %s137
      %p144 = scmp.eq.s32.totalorder %s22, 1
      %p145 = por %p143, %p144
      %p146 = scmp.ne.s32.totalorder %s137, %s138
      %p147 = scmp.eq.s32.totalorder %s22, 0
      %p148 = por %p146, %p147
      %p149 = scmp.ne.s32.totalorder %s137, %s138
      %p150 = scmp.eq.s32.totalorder %s23, 1
      %p151 = por %p149, %p150
      %p153 = scmp.ne.s32.totalorder %s138, %s152
      %p154 = scmp.eq.s32.totalorder %s23, 0
      %p155 = por %p153, %p154
      %s157 = sadd.s32 %s156, 1
      %p160 = scmp.eq.s32.totalorder %s17, 1
      %p161 = scmp.ne.s32.totalorder %s156, %s158
      %p162 = scmp.eq.s32.totalorder %s17, 0
      %p163 = por %p161, %p162
      %p164 = scmp.ne.s32.totalorder %s156, %s158
      %p165 = scmp.eq.s32.totalorder %s22, 1
      %p166 = por %p164, %p165
      %p167 = scmp.ne.s32.totalorder %s158, %s159
      %p168 = scmp.eq.s32.totalorder %s22, 0
      %p169 = por %p167, %p168
      %p170 = scmp.ne.s32.totalorder %s158, %s159
      %p171 = scmp.eq.s32.totalorder %s23, 1
      %p172 = por %p170, %p171
      %p174 = scmp.ne.s32.totalorder %s159, %s173
      %p175 = scmp.eq.s32.totalorder %s23, 0
      %p176 = por %p174, %p175
      %s177 = ssub.s32 %s17, %s24
      %p178 = scmp.eq.s32.totalorder %s177, 0
      %s180 = sadd.s32 %s179, 1
      %s181 = scalar_select %p178, %s179, %s180
      %p184 = pneg %p178
      %p185 = scmp.eq.s32.totalorder %s17, 1
      %p186 = por %p184, %p185
      %p187 = scmp.ne.s32.totalorder %s179, %s182
      %p188 = scmp.eq.s32.totalorder %s17, 0
      %p189 = por %p187, %p188
      %p190 = scmp.ne.s32.totalorder %s179, %s182
      %p191 = scmp.eq.s32.totalorder %s22, 1
      %p192 = por %p190, %p191
      %p193 = scmp.ne.s32.totalorder %s182, %s183
      %p194 = scmp.eq.s32.totalorder %s22, 0
      %p195 = por %p193, %p194
      %p196 = scmp.ne.s32.totalorder %s182, %s183
      %p197 = scmp.eq.s32.totalorder %s23, 1
      %p198 = por %p196, %p197
      %p200 = scmp.ne.s32.totalorder %s183, %s199
      %p201 = scmp.eq.s32.totalorder %s23, 0
      %p202 = por %p200, %p201
      %p203 = scmp.le.s32.totalorder 1, %s17
      %p204 = scmp.lt.s32.totalorder %s17, 3
      %p205 = pnand %p203, %p204
      %p206 = pneg %p205
      // Predicated region
      $region9: #{tpu_custom_call.1} parent=5 // pred_check
        _
      $region10: #{tpu_custom_call.1} parent=5 // pred_check_branch
        %208 = sbr.rel (%p205) target = $region12
      $region11: #{tpu_custom_call.1} parent=5 // pred_region
        %s209 = ssub.s32 %s17, 1
        // Predicated region
        $region13: #{tpu_custom_call.1} parent=11 // pred_check
          %p210 = pneg %p64
        $region14: #{tpu_custom_call.1} parent=11 // pred_check_branch
          %212 = sbr.rel (%p210) target = $region16
        $region15: #{tpu_custom_call.1} parent=11 // pred_region
          %s214 = ssub.s32 512, 512
          %215 = vsyncadd [#allocation5], %s214
          %s216 = sshll.u32 [#allocation4], 4
          %s217 = int_to_ptr.vmem [resolvable:$true] %s216
          %222 = dma.hbm_to_vmem [thread:$0]  %s1, 512, %s217, [#allocation5], 64, 64, 4
        $region16: #{tpu_custom_call.1} parent=11 // pred_fallthru
          _
        // Predicated region
        $region17: #{tpu_custom_call.1} parent=11 // pred_check
          %p223 = pneg %p85
        $region18: #{tpu_custom_call.1} parent=11 // pred_check_branch
          %225 = sbr.rel (%p223) target = $region20
        $region19: #{tpu_custom_call.1} parent=11 // pred_region
          _
        $region20: #{tpu_custom_call.1} parent=11 // pred_fallthru
          _
        // Predicated region
        $region21: #{tpu_custom_call.1} parent=11 // pred_check
          %p226 = pneg %p106
        $region22: #{tpu_custom_call.1} parent=11 // pred_check_branch
          %228 = sbr.rel (%p226) target = $region24
        $region23: #{tpu_custom_call.1} parent=11 // pred_region
          _
        $region24: #{tpu_custom_call.1} parent=11 // pred_fallthru
          _
        // Predicated region
        $region25: #{tpu_custom_call.1} parent=11 // pred_check
          %p229 = pneg %p127
        $region26: #{tpu_custom_call.1} parent=11 // pred_check_branch
          %231 = sbr.rel (%p229) target = $region28
        $region27: #{tpu_custom_call.1} parent=11 // pred_region
          _
        $region28: #{tpu_custom_call.1} parent=11 // pred_fallthru
          _
        // Predicated region
        $region29: #{tpu_custom_call.1} parent=11 // pred_check
          %p232 = pneg %p148
        $region30: #{tpu_custom_call.1} parent=11 // pred_check_branch
          %234 = sbr.rel (%p232) target = $region32
        $region31: #{tpu_custom_call.1} parent=11 // pred_region
          _
        $region32: #{tpu_custom_call.1} parent=11 // pred_fallthru
          _
        // Predicated region
        $region33: #{tpu_custom_call.1} parent=11 // pred_check
          %p235 = pneg %p169
        $region34: #{tpu_custom_call.1} parent=11 // pred_check_branch
          %237 = sbr.rel (%p235) target = $region36
        $region35: #{tpu_custom_call.1} parent=11 // pred_region
          _
        $region36: #{tpu_custom_call.1} parent=11 // pred_fallthru
          _
      $region12: #{tpu_custom_call.1} parent=5 // pred_fallthru
        _
      %p238 = scmp.lt.s32.totalorder %s17, 2
      // Predicated region
      $region37: #{tpu_custom_call.1} parent=5 // pred_check
        %p239 = pneg %p238
      $region38: #{tpu_custom_call.1} parent=5 // pred_check_branch
        %241 = sbr.rel (%p239) target = $region40
      $region39: #{tpu_custom_call.1} parent=5 // pred_region
        // Predicated region
        $region41: #{tpu_custom_call.1} parent=39 // pred_check
          %p242 = pneg %p37
        $region42: #{tpu_custom_call.1} parent=39 // pred_check_branch
          %244 = sbr.rel (%p242) target = $region44
        $region43: #{tpu_custom_call.1} parent=39 // pred_region
          %s245 = sand.u32 %s27, 1
          %s246 = scalar_lea.sflag [#allocation3], %s245
          %s247 = sand.u32 %s27, 1
          %s248 = smul.addr %s247, 16
          %s249 = scalar_lea.vmem [#allocation2], %s248
          %s250 = smul.u32 2, %s17
          %s252 = ssub.s32 256, 256
          %253 = vsyncadd %s246, %s252
          %s254 = smul.addr %s250, 128
          %s255 = scalar_lea.hbm %s0, %s254
          %s256 = sshll.u32 %s249, 4
          %s257 = int_to_ptr.vmem [resolvable:$true] %s256
          %262 = dma.hbm_to_vmem [thread:$0]  %s255, 256, %s257, %s246, 128, 128, 8
        $region44: #{tpu_custom_call.1} parent=39 // pred_fallthru
          _
      $region40: #{tpu_custom_call.1} parent=5 // pred_fallthru
        _
      %p263 = scmp.le.s32.totalorder 1, %s17
      %p264 = scmp.lt.s32.totalorder %s17, 3
      %p265 = pnand %p263, %p264
      %p266 = pneg %p265
      // Predicated region
      $region45: #{tpu_custom_call.1} parent=5 // pred_check
        _
      $region46: #{tpu_custom_call.1} parent=5 // pred_check_branch
        %268 = sbr.rel (%p265) target = $region48
      $region47: #{tpu_custom_call.1} parent=5 // pred_region
        %s269 = ssub.s32 %s17, 1
        %s270 = sand.u32 %s30, 1
        %s271 = scalar_lea.sflag [#allocation3], %s270
        %s272 = sand.u32 %s30, 1
        %s273 = smul.addr %s272, 16
        %s274 = scalar_lea.vmem [#allocation2], %s273
        // Predicated region
        $region49: #{tpu_custom_call.1} parent=47 // pred_check
          %p275 = pneg %p43
        $region50: #{tpu_custom_call.1} parent=47 // pred_check_branch
          %277 = sbr.rel (%p275) target = $region52
        $region51: #{tpu_custom_call.1} parent=47 // pred_region
          %278 = dma.done %s271, 256
        $region52: #{tpu_custom_call.1} parent=47 // pred_fallthru
          _
        // Predicated region
        $region53: #{tpu_custom_call.1} parent=47 // pred_check
          %p279 = pneg %p64
        $region54: #{tpu_custom_call.1} parent=47 // pred_check_branch
          %281 = sbr.rel (%p279) target = $region56
        $region55: #{tpu_custom_call.1} parent=47 // pred_region
          %282 = dma.done [#allocation5], 512
        $region56: #{tpu_custom_call.1} parent=47 // pred_fallthru
          _
        %s283 = sand.u32 %s30, 1
        %s284 = scalar_lea.sflag [#allocation3], %s283
        %s285 = sand.u32 %s30, 1
        %s286 = smul.addr %s285, 16
        %s287 = scalar_lea.vmem [#allocation2], %s286
        %p288 = pneg %p43
        %p289 = pneg %p40
        %p290 = pneg %p64
        %p291 = pneg %p61
        %p292 = pneg %p85
        %p293 = pneg %p82
        %p294 = pneg %p106
        %p295 = pneg %p103
        %p296 = pneg %p127
        %p297 = pneg %p124
        %p298 = pneg %p148
        %p299 = pneg %p145
        %p300 = pneg %p169
        %p301 = pneg %p166
        %p302 = pneg %p195
        %p303 = pneg %p192
        %s304 = smul.u32 2, %s22
        %p305 = scmp.lt.s32.totalorder %s304, 3
        %s306 = scalar_select %p305, %s304, 3
        %s307 = smul.addr %s306, 8
        %s308 = scalar_lea.vmem %s7, %s307
        %s309 = smul.u32 2, %s22
        %s310 = smul.u32 2, %s22
        %p311 = scmp.lt.s32.totalorder %s310, 3
        %s312 = scalar_select %p311, %s310, 3
        %s313 = smul.addr %s312, 8
        %s314 = scalar_lea.vmem %s7, %s313
        %s315 = smul.u32 2, %s22
        %v317 = vld [vmem:[%s274] sm:$0xff]
        %v318 = vld [vmem:[%s274 + $0x8] sm:$0xff]
        %v319 = vpack.c.bf16 %v318, %v317
        %v320 = vld [vmem:[#allocation4] sm:$0xf]
        %v321 = vld [vmem:[#allocation4 + $0x4] sm:$0xf]
        %v322 = vld [vmem:[#allocation4 + $0x8] sm:$0xf]
        %v323 = vld [vmem:[#allocation4 + $0xc] sm:$0xf]
        %v324 = vld [vmem:[#allocation4 + $0x10] sm:$0xf]
        %v325 = vld [vmem:[#allocation4 + $0x14] sm:$0xf]
        %v326 = vld [vmem:[#allocation4 + $0x18] sm:$0xf]
        %v327 = vld [vmem:[#allocation4 + $0x1c] sm:$0xf]
        %v328 = vld [vmem:[%s2] sm:$0x1]
        %v330 = vlaneseq
        %v331 = vshrl.u32 %v330, 7
        %v332 = vsub.s32 0, %v331
        %v333 = vrot.slane %v328, %v332
        %v343 = vunpack.c.l.b16 %v320
        %v344 = vunpack.c.l.b16 %v321
        %v345 = vunpack.c.l.b16 %v322
        %v346 = vunpack.c.l.b16 %v323
        %v347 = vunpack.c.l.b16 %v324
        %v348 = vunpack.c.l.b16 %v325
        %v349 = vunpack.c.l.b16 %v326
        %v350 = vunpack.c.l.b16 %v327
        %v351 = vpack.c.b16 %v344, %v343
        %v352 = vpack.c.b16 %v346, %v345
        %v353 = vpack.c.b16 %v348, %v347
        %v354 = vpack.c.b16 %v350, %v349
        %vm359 = vcmask 523264
        %v361 = vsel %vm359, %v319, 0
        %363 = vmatprep.subr.bf16.mxu0 0
        %364 = vmatpush1.bf16.msra.mxu0 0
        %365 = vmatprep.subr.bf16.mxu0 0
        %366 = vmatpush1.bf16.msra.mxu0 0
        %367 = vmatprep.subr.bf16.mxu0 0
        %368 = vmatpush1.bf16.msra.mxu0 0
        %369 = vmatprep.subr.bf16.mxu0 0
        %370 = vmatpush1.bf16.msra.mxu0 0
        %371 = vmatprep.subr.bf16.mxu0 0
        %372 = vmatpush1.bf16.msra.mxu0 %v354
        %373 = vmatprep.subr.bf16.mxu0 0
        %374 = vmatpush1.bf16.msra.mxu0 %v353
        %375 = vmatprep.subr.bf16.mxu0 0
        %376 = vmatpush1.bf16.msra.mxu0 %v352
        %377 = vmatprep.subr.bf16.mxu0 0
        %378 = vmatpush1.bf16.msra.mxu0 %v351
        %379 = vmatprep.subr.bf16.mxu0 0
        %380 = vmatpush2.bf16.msra.mxu0 0
        %381 = vmatprep.subr.bf16.mxu0 0
        %382 = vmatpush2.bf16.msra.mxu0 0
        %383 = vmatprep.subr.bf16.mxu0 0
        %384 = vmatpush2.bf16.msra.mxu0 0
        %385 = vmatprep.subr.bf16.mxu0 0
        %386 = vmatpush2.bf16.msra.mxu0 0
        %387 = vmatprep.subr.bf16.mxu0 0
        %388 = vmatpush2.bf16.msra.mxu0 0
        %389 = vmatprep.subr.bf16.mxu0 0
        %390 = vmatpush2.bf16.msra.mxu0 0
        %391 = vmatprep.subr.bf16.mxu0 0
        %392 = vmatpush2.bf16.msra.mxu0 0
        %393 = vmatprep.subr.bf16.mxu0 0
        %394 = vmatpush2.bf16.msra.mxu0 0
        %395 = vmatprep.mubr.bf16.mxu0 0
        %396 = vmatmul.mubr.bf16.gmra.mxu0 %v361
        %v397 = vpop.f32.mrf.mxu0
        %v398 = vadd.f32 %v333, %v397
        %v399 = vpop.f32.mrf.mxu0
        %v400 = vpop.f32.mrf.mxu0
        %v401 = vadd.f32 %v333, %v400
        %v402 = vpop.f32.mrf.mxu0
        %403 = vdwg.mxu0
        %v404 = vmax.f32 %v398, 0.0
        %v405 = vmax.f32 %v401, 0.0
        %v406 = vpack.c.bf16 %v405, %v404
        %v407 = vld [vmem:[%s3] sm:$0xf]
        %v408 = vld [vmem:[%s3 + $0x4] sm:$0xf]
        %v409 = vld [vmem:[%s3 + $0x8] sm:$0xf]
        %v410 = vld [vmem:[%s3 + $0xc] sm:$0xf]
        %v411 = vld [vmem:[%s3 + $0x10] sm:$0xf]
        %v412 = vld [vmem:[%s3 + $0x14] sm:$0xf]
        %v413 = vld [vmem:[%s3 + $0x18] sm:$0xf]
        %v414 = vld [vmem:[%s3 + $0x1c] sm:$0xf]
        %v415 = vld [vmem:[%s3 + $0x20] sm:$0xf]
        %v416 = vld [vmem:[%s3 + $0x24] sm:$0xf]
        %v417 = vld [vmem:[%s3 + $0x28] sm:$0xf]
        %v418 = vld [vmem:[%s3 + $0x2c] sm:$0xf]
        %v419 = vld [vmem:[%s3 + $0x30] sm:$0xf]
        %v420 = vld [vmem:[%s3 + $0x34] sm:$0xf]
        %v421 = vld [vmem:[%s3 + $0x38] sm:$0xf]
        %v422 = vld [vmem:[%s3 + $0x3c] sm:$0xf]
        %v423 = vld [vmem:[%s4] sm:$0x1]
        %v425 = vlaneseq
        %v426 = vshrl.u32 %v425, 7
        %v427 = vsub.s32 0, %v426
        %v428 = vrot.slane %v423, %v427
        %v446 = vunpack.c.l.b16 %v407
        %v447 = vunpack.c.l.b16 %v408
        %v448 = vunpack.c.l.b16 %v409
        %v449 = vunpack.c.l.b16 %v410
        %v450 = vunpack.c.l.b16 %v411
        %v451 = vunpack.c.l.b16 %v412
        %v452 = vunpack.c.l.b16 %v413
        %v453 = vunpack.c.l.b16 %v414
        %v454 = vunpack.c.l.b16 %v415
        %v455 = vunpack.c.l.b16 %v416
        %v456 = vunpack.c.l.b16 %v417
        %v457 = vunpack.c.l.b16 %v418
        %v458 = vunpack.c.l.b16 %v419
        %v459 = vunpack.c.l.b16 %v420
        %v460 = vunpack.c.l.b16 %v421
        %v461 = vunpack.c.l.b16 %v422
        %v462 = vpack.c.b16 %v447, %v446
        %v463 = vpack.c.b16 %v449, %v448
        %v464 = vpack.c.b16 %v451, %v450
        %v465 = vpack.c.b16 %v453, %v452
        %v466 = vpack.c.b16 %v455, %v454
        %v467 = vpack.c.b16 %v457, %v456
        %v468 = vpack.c.b16 %v459, %v458
        %v469 = vpack.c.b16 %v461, %v460
        %478 = vmatprep.subr.bf16.mxu0 0
        %479 = vmatpush1.bf16.msra.mxu0 %v469
        %480 = vmatprep.subr.bf16.mxu0 0
        %481 = vmatpush1.bf16.msra.mxu0 %v468
        %482 = vmatprep.subr.bf16.mxu0 0
        %483 = vmatpush1.bf16.msra.mxu0 %v467
        %484 = vmatprep.subr.bf16.mxu0 0
        %485 = vmatpush1.bf16.msra.mxu0 %v466
        %486 = vmatprep.subr.bf16.mxu0 0
        %487 = vmatpush1.bf16.msra.mxu0 %v465
        %488 = vmatprep.subr.bf16.mxu0 0
        %489 = vmatpush1.bf16.msra.mxu0 %v464
        %490 = vmatprep.subr.bf16.mxu0 0
        %491 = vmatpush1.bf16.msra.mxu0 %v463
        %492 = vmatprep.subr.bf16.mxu0 0
        %493 = vmatpush1.bf16.msra.mxu0 %v462
        %494 = vmatprep.subr.bf16.mxu0 0
        %495 = vmatpush2.bf16.msra.mxu0 0
        %496 = vmatprep.subr.bf16.mxu0 0
        %497 = vmatpush2.bf16.msra.mxu0 0
        %498 = vmatprep.subr.bf16.mxu0 0
        %499 = vmatpush2.bf16.msra.mxu0 0
        %500 = vmatprep.subr.bf16.mxu0 0
        %501 = vmatpush2.bf16.msra.mxu0 0
        %502 = vmatprep.subr.bf16.mxu0 0
        %503 = vmatpush2.bf16.msra.mxu0 0
        %504 = vmatprep.subr.bf16.mxu0 0
        %505 = vmatpush2.bf16.msra.mxu0 0
        %506 = vmatprep.subr.bf16.mxu0 0
        %507 = vmatpush2.bf16.msra.mxu0 0
        %508 = vmatprep.subr.bf16.mxu0 0
        %509 = vmatpush2.bf16.msra.mxu0 0
        %510 = vmatprep.mubr.bf16.mxu0 0
        %511 = vmatmul.mubr.bf16.gmra.mxu0 %v406
        %v512 = vpop.f32.mrf.mxu0
        %v513 = vadd.f32 %v428, %v512
        %v514 = vpop.f32.mrf.mxu0
        %v515 = vpop.f32.mrf.mxu0
        %v516 = vadd.f32 %v428, %v515
        %v517 = vpop.f32.mrf.mxu0
        %518 = vdwg.mxu0
        %v519 = vmax.f32 %v513, 0.0
        %v520 = vmax.f32 %v516, 0.0
        %v521 = vpack.c.bf16 %v520, %v519
        %v522 = vld [vmem:[%s5] sm:$0xf]
        %v523 = vld [vmem:[%s5 + $0x4] sm:$0xf]
        %v524 = vld [vmem:[%s5 + $0x8] sm:$0xf]
        %v525 = vld [vmem:[%s5 + $0xc] sm:$0xf]
        %v526 = vld [vmem:[%s5 + $0x10] sm:$0xf]
        %v527 = vld [vmem:[%s5 + $0x14] sm:$0xf]
        %v528 = vld [vmem:[%s5 + $0x18] sm:$0xf]
        %v529 = vld [vmem:[%s5 + $0x1c] sm:$0xf]
        %v530 = vld [vmem:[%s5 + $0x20] sm:$0xf]
        %v531 = vld [vmem:[%s5 + $0x24] sm:$0xf]
        %v532 = vld [vmem:[%s5 + $0x28] sm:$0xf]
        %v533 = vld [vmem:[%s5 + $0x2c] sm:$0xf]
        %v534 = vld [vmem:[%s5 + $0x30] sm:$0xf]
        %v535 = vld [vmem:[%s5 + $0x34] sm:$0xf]
        %v536 = vld [vmem:[%s5 + $0x38] sm:$0xf]
        %v537 = vld [vmem:[%s5 + $0x3c] sm:$0xf]
        %v538 = vld [vmem:[%s6] sm:$0x1]
        %v540 = vlaneseq
        %v541 = vshrl.u32 %v540, 7
        %v542 = vsub.s32 0, %v541
        %v543 = vrot.slane %v538, %v542
        %v561 = vunpack.c.l.b16 %v522
        %v562 = vunpack.c.l.b16 %v523
        %v563 = vunpack.c.l.b16 %v524
        %v564 = vunpack.c.l.b16 %v525
        %v565 = vunpack.c.l.b16 %v526
        %v566 = vunpack.c.l.b16 %v527
        %v567 = vunpack.c.l.b16 %v528
        %v568 = vunpack.c.l.b16 %v529
        %v569 = vunpack.c.l.b16 %v530
        %v570 = vunpack.c.l.b16 %v531
        %v571 = vunpack.c.l.b16 %v532
        %v572 = vunpack.c.l.b16 %v533
        %v573 = vunpack.c.l.b16 %v534
        %v574 = vunpack.c.l.b16 %v535
        %v575 = vunpack.c.l.b16 %v536
        %v576 = vunpack.c.l.b16 %v537
        %v577 = vpack.c.b16 %v562, %v561
        %v578 = vpack.c.b16 %v564, %v563
        %v579 = vpack.c.b16 %v566, %v565
        %v580 = vpack.c.b16 %v568, %v567
        %v581 = vpack.c.b16 %v570, %v569
        %v582 = vpack.c.b16 %v572, %v571
        %v583 = vpack.c.b16 %v574, %v573
        %v584 = vpack.c.b16 %v576, %v575
        %593 = vmatprep.subr.bf16.mxu0 0
        %594 = vmatpush1.bf16.msra.mxu0 %v584
        %595 = vmatprep.subr.bf16.mxu0 0
        %596 = vmatpush1.bf16.msra.mxu0 %v583
        %597 = vmatprep.subr.bf16.mxu0 0
        %598 = vmatpush1.bf16.msra.mxu0 %v582
        %599 = vmatprep.subr.bf16.mxu0 0
        %600 = vmatpush1.bf16.msra.mxu0 %v581
        %601 = vmatprep.subr.bf16.mxu0 0
        %602 = vmatpush1.bf16.msra.mxu0 %v580
        %603 = vmatprep.subr.bf16.mxu0 0
        %604 = vmatpush1.bf16.msra.mxu0 %v579
        %605 = vmatprep.subr.bf16.mxu0 0
        %606 = vmatpush1.bf16.msra.mxu0 %v578
        %607 = vmatprep.subr.bf16.mxu0 0
        %608 = vmatpush1.bf16.msra.mxu0 %v577
        %609 = vmatprep.subr.bf16.mxu0 0
        %610 = vmatpush2.bf16.msra.mxu0 0
        %611 = vmatprep.subr.bf16.mxu0 0
        %612 = vmatpush2.bf16.msra.mxu0 0
        %613 = vmatprep.subr.bf16.mxu0 0
        %614 = vmatpush2.bf16.msra.mxu0 0
        %615 = vmatprep.subr.bf16.mxu0 0
        %616 = vmatpush2.bf16.msra.mxu0 0
        %617 = vmatprep.subr.bf16.mxu0 0
        %618 = vmatpush2.bf16.msra.mxu0 0
        %619 = vmatprep.subr.bf16.mxu0 0
        %620 = vmatpush2.bf16.msra.mxu0 0
        %621 = vmatprep.subr.bf16.mxu0 0
        %622 = vmatpush2.bf16.msra.mxu0 0
        %623 = vmatprep.subr.bf16.mxu0 0
        %624 = vmatpush2.bf16.msra.mxu0 0
        %625 = vmatprep.mubr.bf16.mxu0 0
        %626 = vmatmul.mubr.bf16.gmra.mxu0 %v521
        %v627 = vpop.f32.mrf.mxu0
        %v628 = vadd.f32 %v543, %v627
        %v629 = vpop.f32.mrf.mxu0
        %v630 = vpop.f32.mrf.mxu0
        %v631 = vadd.f32 %v543, %v630
        %v632 = vpop.f32.mrf.mxu0
        %633 = vdwg.mxu0
        %vm634 = vcmask 130048
        %v635 = vsel %vm634, %v628, -inf
        %636 = vmax.xlane.f32.xlu0 %v635
        %v637 = vpop.xlane.xlu0 %636
        %v638 = vsel %vm634, %v631, -inf
        %639 = vmax.xlane.f32.xlu0 %v638
        %v640 = vpop.xlane.xlu0 %639
        %v641 = vsub.f32 %v628, %v637
        %v642 = vsub.f32 %v631, %v640
        %v643 = vmul.f32 %v641, 1.442695
        %v644 = vpow.pop %v643
        %v645 = vmul.f32 %v642, 1.442695
        %v646 = vpow.pop %v645
        %v647 = vsel %vm634, %v644, 0.0
        %648 = vadd.xlane.f32.xlu0 %v647
        %v649 = vpop.xlane.xlu0 %648
        %v650 = vsel %vm634, %v646, 0.0
        %651 = vadd.xlane.f32.xlu0 %v650
        %v652 = vpop.xlane.xlu0 %651
        %v653 = vlog2.pop %v649
        %v654 = vmul.f32 %v653, 0.6931472
        %v655 = vlog2.pop %v652
        %v656 = vmul.f32 %v655, 0.6931472
        %v657 = vsub.f32 %v641, %v654
        %v658 = vsub.f32 %v642, %v656
        %659 = vst.msk [vmem:[%s314] sm:$0xff] %vm634, %v657
        %660 = vst.msk [vmem:[%s314 + $0x8] sm:$0xff] %vm634, %v658
        %s661 = smul.u32 2, %s22
        %p662 = scmp.lt.s32.totalorder %s661, 3
        %s663 = scalar_select %p662, %s661, 3
        %s664 = smul.addr %s663, 8
        %s665 = scalar_lea.vmem %s7, %s664
        // Predicated region
        $region57: #{tpu_custom_call.1} parent=47 // pred_check
          %p666 = pneg %p192
        $region58: #{tpu_custom_call.1} parent=47 // pred_check_branch
          %668 = sbr.rel (%p666) target = $region60
        $region59: #{tpu_custom_call.1} parent=47 // pred_region
          %s669 = smul.u32 2, %s22
        $region60: #{tpu_custom_call.1} parent=47 // pred_fallthru
          _
      $region48: #{tpu_custom_call.1} parent=5 // pred_fallthru
        _
      %p670 = scmp.le.s32.totalorder 2, %s17
      // Predicated region
      $region61: #{tpu_custom_call.1} parent=5 // pred_check
        %p671 = pneg %p670
      $region62: #{tpu_custom_call.1} parent=5 // pred_check_branch
        %673 = sbr.rel (%p671) target = $region64
      $region63: #{tpu_custom_call.1} parent=5 // pred_region
        %s674 = ssub.s32 %s17, 2
        // Predicated region
        $region65: #{tpu_custom_call.1} parent=63 // pred_check
          %p675 = pneg %p198
        $region66: #{tpu_custom_call.1} parent=63 // pred_check_branch
          %677 = sbr.rel (%p675) target = $region68
        $region67: #{tpu_custom_call.1} parent=63 // pred_region
          %s678 = smul.u32 2, %s23
          %p679 = scmp.lt.s32.totalorder %s678, 3
          %s680 = scalar_select %p679, %s678, 3
          %s681 = smul.addr %s680, 8
          %s682 = scalar_lea.vmem %s7, %s681
        $region68: #{tpu_custom_call.1} parent=63 // pred_fallthru
          _
      $region64: #{tpu_custom_call.1} parent=5 // pred_fallthru
        _
    $region6: #{tpu_custom_call.1} parent=1 // loop_footer
      %s21 = sadd.s32 1, %s17
    $region7: #{tpu_custom_call.1} parent=1 // loop_footer_branch
      %16 = sbr.rel target = $region3
    $region8: #{tpu_custom_call.1} parent=1 // loop_exit
      _
    %683 = vsyncpa [#allocation3], 1
    %s684 = scalar_lea.sflag [#allocation3], 1
    %685 = vsyncpa %s684, 1
    %686 = vsyncpa [#allocation5], 1

</llo_original>
